<compile_context>
chip_gen: v7x
topology: tpu7x:2x2x1
jax: 0.10.0
libtpu: 0.0.40
codegen_flags: <defaults>
</compile_context>

<pallas_src>
import functools

import jax
import jax.numpy as jnp
from jax.experimental import pallas as pl
from jax.experimental.pallas import tpu as pltpu

NUM_ACTIONS = 12  # forward hard-codes input[:, 1:13]


def _action_kernel(x_ref, w_ref, b_ref, o_ref):
    # x_ref: (TB, N*H)  VMEM input block (flattened nodes*hidden, lane-dense)
    # w_ref: (N*H, 12)  VMEM resident block-diagonal weight
    # b_ref: (1,)       SMEM bias (scalar path)
    # o_ref: (TB, 12)   VMEM output block
    y = jnp.dot(x_ref[...], w_ref[...], preferred_element_type=jnp.float32)
    o_ref[...] = (y + b_ref[0]).astype(o_ref.dtype)


def _pick_block_b(B, target=1024):
    """<= target rows per step; even number of steps for balanced megacore split."""
    if B <= target:
        return B
    n_steps = 2 * (-(-B // (2 * target)))      # even step count
    bb = -(-B // n_steps)
    return -(-bb // 8) * 8                     # batch block must be a multiple of 8


@functools.partial(jax.jit, static_argnames=("block_b",))
def action_layer(x, weight, bias, *, block_b=None):
    """x: [B, N, H]; weight: [1, H] (torch [out, in]); bias: [1]  ->  [B, 12]."""
    B, N, H = x.shape
    assert N >= 13, "forward slices nodes 1:13"
    NH = N * H

    if block_b is None:
        block_b = _pick_block_b(B)
    # (8,128) rule on the batch axis of the (block_b, NH) / (block_b, 12) blocks.
    assert block_b == B or block_b % 8 == 0

    # Free, contiguous reshape: lane-dense trailing dim for the DMA.
    x_flat = x.reshape(B, NH)

    # Block-diagonal weight folding the 1:13 node selection into the matmul:
    #   W_big[H*(n+1) + h, n] = weight[0, h];  node-0 / unused-node rows stay zero.
    w = weight.reshape(H).astype(x.dtype)                                  # (H,)
    eye = jnp.eye(NUM_ACTIONS, dtype=x.dtype)                              # (12, 12)
    core = (eye[:, None, :] * w[None, :, None]).reshape(NUM_ACTIONS * H, NUM_ACTIONS)
    w_big = jnp.concatenate(
        [jnp.zeros((H, NUM_ACTIONS), dtype=x.dtype), core], axis=0)        # (13*H, 12)
    if NH > (NUM_ACTIONS + 1) * H:
        w_big = jnp.concatenate(
            [w_big,
             jnp.zeros((NH - (NUM_ACTIONS + 1) * H, NUM_ACTIONS), dtype=x.dtype)],
            axis=0)                                                        # (N*H, 12)

    grid = (pl.cdiv(B, block_b),)

    out = pl.pallas_call(
        _action_kernel,
        out_shape=jax.ShapeDtypeStruct((B, NUM_ACTIONS), x.dtype),
        grid=grid,
        in_specs=[
            # flattened input: batch axis tiled & double-buffered, full 416-wide rows
            pl.BlockSpec((block_b, NH), lambda i: (i, 0)),
            # block-diagonal weight: same small block every step -> stays resident
            pl.BlockSpec((NH, NUM_ACTIONS), lambda i: (0, 0)),
            # bias: whole (1,) array in SMEM -> scalar read, no vector tile
            pl.BlockSpec(memory_space=pltpu.MemorySpace.SMEM),
        ],
        out_specs=pl.BlockSpec((block_b, NUM_ACTIONS), lambda i: (i, 0)),
        compiler_params=pltpu.CompilerParams(
            dimension_semantics=("parallel",),   # megacore-shard the batch axis
        ),
    )(x_flat, w_big, bias)
    return out


if __name__ == "__main__":
    key = jax.random.PRNGKey(0)
    k_x, k_w, k_b, k_x2 = jax.random.split(key, 4)

    # Module-native small shapes: hidden_features=32, num_actions=12, 13 graph nodes.
    B, N, H = 2, 13, 32
    x = jax.random.normal(k_x, (B, N, H), dtype=jnp.float32)
    weight = jax.random.normal(k_w, (1, H), dtype=jnp.float32) * 0.1   # torch [out, in]
    bias = jax.random.normal(k_b, (1,), dtype=jnp.float32) * 0.1

    def ref_fn(xx):
        # pure f32 elementwise reference (matches torch nn.Linear in f32)
        return jnp.sum(xx[:, 1:13, :] * weight[0], axis=-1) + bias[0]

    out = jax.block_until_ready(action_layer(x, weight, bias))
    assert out.shape == (B, NUM_ACTIONS)
    assert jnp.allclose(out, ref_fn(x), atol=1e-3, rtol=1e-3), "small-case mismatch"

    # Larger batch exercising the tiled/pipelined path (multi-step grid with a
    # partial final block: block_b=632 -> grid=4, last block 604 rows, masked).
    B2 = 2500
    x2 = jax.random.normal(k_x2, (B2, N, H), dtype=jnp.float32)
    out2 = jax.block_until_ready(action_layer(x2, weight, bias))
    assert out2.shape == (B2, NUM_ACTIONS)
    assert jnp.allclose(out2, ref_fn(x2), atol=1e-3, rtol=1e-3), "tiled-case mismatch"

    print("KERNEL_OK")
</pallas_src>

<mosaic_0001>
module attributes {stable_mosaic.version = 11 : i64} {
  func.func @_action_kernel(%arg0: i32, %arg1: memref<2x416xf32, #tpu.memory_space<vmem>>, %arg2: memref<416x12xf32, #tpu.memory_space<vmem>>, %arg3: memref<1xf32, #tpu.memory_space<smem>>, %arg4: memref<2x12xf32, #tpu.memory_space<vmem>>) attributes {dimension_semantics = [#tpu.dimension_semantics<parallel>], iteration_bounds = array<i64: 1>, scalar_prefetch = 0 : i64, scratch_operands = 0 : i64, tpu.core_type = #tpu.core_type<tc>, window_params = [{transform_indices = @transform_0, window_bounds = array<i64: 2, 416>}, {pipeline_mode = #tpu.pipeline_mode<synchronous>, transform_indices = @transform_1, window_bounds = array<i64: 416, 12>}, {transform_indices = @transform_2, window_bounds = array<i64: 1>}, {transform_indices = @transform_3, window_bounds = array<i64: 2, 12>}]} {
    %c0 = arith.constant 0 : index
    %c0_0 = arith.constant 0 : index
    %0 = vector.load %arg1[%c0, %c0_0] : memref<2x416xf32, #tpu.memory_space<vmem>>, vector<2x416xf32>
    %c0_1 = arith.constant 0 : index
    %c0_2 = arith.constant 0 : index
    %1 = vector.load %arg2[%c0_1, %c0_2] : memref<416x12xf32, #tpu.memory_space<vmem>>, vector<416x12xf32>
    %cst = arith.constant dense<0.000000e+00> : vector<2x12xf32>
    %2 = tpu.matmul %0, %1, %cst {dimension_numbers = #tpu.dot_dimension_numbers<[1], [0], [0], [1], [0, 0, 1, 1], [], []>} : vector<2x416xf32>, vector<416x12xf32>, vector<2x12xf32> -> vector<2x12xf32>
    %c0_3 = arith.constant 0 : index
    %3 = memref.load %arg3[%c0_3] : memref<1xf32, #tpu.memory_space<smem>>
    %4 = vector.broadcast %3 : f32 to vector<2x12xf32>
    %5 = arith.addf %2, %4 : vector<2x12xf32>
    %c0_4 = arith.constant 0 : index
    %c0_5 = arith.constant 0 : index
    %6 = vector.load %arg4[%c0_4, %c0_5] : memref<2x12xf32, #tpu.memory_space<vmem>>, vector<2x12xf32>
    tpu.vector_store %arg4[%c0_4, %c0_5], %5 {strides = array<i32>} : memref<2x12xf32, #tpu.memory_space<vmem>>, vector<2x12xf32>,
    return
  }
  func.func @transform_0(%arg0: i32) -> (i32, i32) {
    %c0_i32 = arith.constant 0 : i32
    %c0_i32_0 = arith.constant 0 : i32
    return %arg0, %c0_i32 : i32, i32
  }
  func.func @transform_1(%arg0: i32) -> (i32, i32) {
    %c0_i32 = arith.constant 0 : i32
    %c0_i32_0 = arith.constant 0 : i32
    %c0_i32_1 = arith.constant 0 : i32
    return %c0_i32, %c0_i32_0 : i32, i32
  }
  func.func @transform_2(%arg0: i32) -> i32 {
    %c0_i32 = arith.constant 0 : i32
    %c0_i32_0 = arith.constant 0 : i32
    return %c0_i32 : i32
  }
  func.func @transform_3(%arg0: i32) -> (i32, i32) {
    %c0_i32 = arith.constant 0 : i32
    %c0_i32_0 = arith.constant 0 : i32
    return %arg0, %c0_i32 : i32, i32
  }
}

</mosaic_0001>

<llo_original>
// kernel: action_layer.1
$region0: #{action_layer.1}
  #allocation0 [shape = 'u32[]', space=smem, size = 0x4, offset = 0x4, fixed_abs, tag = 'smem constant byte address 0x4 - core index']
  #allocation1 [shape = 'u32[144,128]{1,0:T(1,128)}', space=vmem, size = 0x12000, scoped, tag = 'internal scratch']
  #allocation2 [shape = 'f32[1]{0:T(128)S(6)}', space=smem, size = 0x200, scoped, tag = 'scoped memory for action_layer.1']
  %s0 = inlined_call_operand.vmem [shape: f32[2,416], index: 0, kind: input, shape index: {}]
  %s1 = inlined_call_operand.vmem [shape: f32[416,12], index: 1, kind: input, shape index: {}]
  %s2 = inlined_call_operand.<no memory space> [shape: f32[1], index: 2, kind: input, shape index: {}]
  %s3 = inlined_call_operand.hbm [shape: f32[2,12], index: 3, kind: output, shape index: {}]
  %s4 = sld [smem:[#allocation0]]
  $region22: #{action_layer.1} parent=0
    _
  %s6 = ssub.s32 1, %s4
  %s7 = scalar_select 0, %s6, %s4
  %8 = sst [smem:[#allocation2]] %s2
  $region1: #{action_layer.1} parent=0
    #allocation3 [shape = 'u8[1024]{0}', space=vmem, size = 0x400, scoped, tag = 'output window, operand 0, single buffered']
    #allocation4 [shape = 's32[1]{0}', space=sflag, size = 0x4, scoped, tag = 'scoped memory for action_layer.1']
    %9 = vsyncpa [#allocation4], 0
    // Predicated region
    $region2: #{action_layer.1} parent=1 // pred_check
      _
    $region3: #{action_layer.1} parent=1 // pred_check_branch
      %11 = sbr.rel (0) target = $region5
    $region4: #{action_layer.1} parent=1 // pred_region
      _
    $region5: #{action_layer.1} parent=1 // pred_fallthru
      _
    // Predicated region
    $region6: #{action_layer.1} parent=1 // pred_check
      _
    $region7: #{action_layer.1} parent=1 // pred_check_branch
      %13 = sbr.rel (0) target = $region9
    $region8: #{action_layer.1} parent=1 // pred_region
      _
    $region9: #{action_layer.1} parent=1 // pred_fallthru
      _
    // Predicated region
    $region10: #{action_layer.1} parent=1 // pred_check
      _
    $region11: #{action_layer.1} parent=1 // pred_check_branch
      %15 = sbr.rel (0) target = $region13
    $region12: #{action_layer.1} parent=1 // pred_region
      _
    $region13: #{action_layer.1} parent=1 // pred_fallthru
      _
    %v16 = vld [vmem:[%s0] sm:$0xff]
    %v17 = vld [vmem:[%s1] sm:$0xff]
    %v18 = vld [vmem:[%s1 + $0x8] sm:$0xff]
    %v19 = vld [vmem:[%s1 + $0x10] sm:$0xff]
    %v20 = vld [vmem:[%s1 + $0x18] sm:$0xff]
    %v21 = vld [vmem:[%s1 + $0x20] sm:$0xff]
    %v22 = vld [vmem:[%s1 + $0x28] sm:$0xff]
    %v23 = vld [vmem:[%s1 + $0x30] sm:$0xff]
    %v24 = vld [vmem:[%s1 + $0x38] sm:$0xff]
    %v25 = vld [vmem:[%s1 + $0x40] sm:$0xff]
    %v26 = vld [vmem:[%s1 + $0x48] sm:$0xff]
    %v27 = vld [vmem:[%s1 + $0x50] sm:$0xff]
    %v28 = vld [vmem:[%s1 + $0x58] sm:$0xff]
    %v29 = vld [vmem:[%s1 + $0x60] sm:$0xff]
    %v30 = vld [vmem:[%s1 + $0x68] sm:$0xff]
    %v31 = vld [vmem:[%s1 + $0x70] sm:$0xff]
    %v32 = vld [vmem:[%s1 + $0x78] sm:$0xff]
    %v33 = vld [vmem:[%s1 + $0x80] sm:$0xff]
    %v34 = vld [vmem:[%s1 + $0x88] sm:$0xff]
    %v35 = vld [vmem:[%s1 + $0x90] sm:$0xff]
    %v36 = vld [vmem:[%s1 + $0x98] sm:$0xff]
    %v37 = vld [vmem:[%s1 + $0xa0] sm:$0xff]
    %v38 = vld [vmem:[%s1 + $0xa8] sm:$0xff]
    %v39 = vld [vmem:[%s1 + $0xb0] sm:$0xff]
    %v40 = vld [vmem:[%s1 + $0xb8] sm:$0xff]
    %v41 = vld [vmem:[%s1 + $0xc0] sm:$0xff]
    %v42 = vld [vmem:[%s1 + $0xc8] sm:$0xff]
    %v43 = vld [vmem:[%s1 + $0xd0] sm:$0xff]
    %v44 = vld [vmem:[%s1 + $0xd8] sm:$0xff]
    %v45 = vld [vmem:[%s1 + $0xe0] sm:$0xff]
    %v46 = vld [vmem:[%s1 + $0xe8] sm:$0xff]
    %v47 = vld [vmem:[%s1 + $0xf0] sm:$0xff]
    %v48 = vld [vmem:[%s1 + $0xf8] sm:$0xff]
    %v49 = vld [vmem:[%s1 + $0x100] sm:$0xff]
    %v50 = vld [vmem:[%s1 + $0x108] sm:$0xff]
    %v51 = vld [vmem:[%s1 + $0x110] sm:$0xff]
    %v52 = vld [vmem:[%s1 + $0x118] sm:$0xff]
    %v53 = vld [vmem:[%s1 + $0x120] sm:$0xff]
    %v54 = vld [vmem:[%s1 + $0x128] sm:$0xff]
    %v55 = vld [vmem:[%s1 + $0x130] sm:$0xff]
    %v56 = vld [vmem:[%s1 + $0x138] sm:$0xff]
    %v57 = vld [vmem:[%s1 + $0x140] sm:$0xff]
    %v58 = vld [vmem:[%s1 + $0x148] sm:$0xff]
    %v59 = vld [vmem:[%s1 + $0x150] sm:$0xff]
    %v60 = vld [vmem:[%s1 + $0x158] sm:$0xff]
    %v61 = vld [vmem:[%s1 + $0x160] sm:$0xff]
    %v62 = vld [vmem:[%s1 + $0x168] sm:$0xff]
    %v63 = vld [vmem:[%s1 + $0x170] sm:$0xff]
    %v64 = vld [vmem:[%s1 + $0x178] sm:$0xff]
    %v65 = vld [vmem:[%s1 + $0x180] sm:$0xff]
    %v66 = vld [vmem:[%s1 + $0x188] sm:$0xff]
    %v67 = vld [vmem:[%s1 + $0x190] sm:$0xff]
    %v68 = vld [vmem:[%s1 + $0x198] sm:$0xff]
    %s69 = sld [smem:[#allocation2]]
    %v70 = vstv %s69
    %v72 = vcombine.high %v16, %v16
    %v74 = vunpack.c.l.s4 1983009808
    %v75 = vunpack.c.0.s8 %v74
    %v76 = vlaneseq
    %v77 = vshrl.u32 %v76, 7
    %v78 = vsub.s32 %v75, %v77
    %v79 = vrot.slane %v16, %v78
    %v81 = vunpack.c.l.s4 1983009808
    %v82 = vunpack.c.0.s8 %v81
    %v83 = vlaneseq
    %v84 = vshrl.u32 %v83, 7
    %v85 = vsub.s32 %v82, %v84
    %v86 = vrot.slane %v72, %v85
    %v87 = vcombine.high %v79, %v79
    %v88 = vcombine.high %v86, %v86
    %vm92 = vcmask 261120
    %v93 = vsel %vm92, %v88, 0
    %95 = vmatprep.subr.mxu0 0.0
    %96 = vmatpush1.msra.mxu0 %v17
    %97 = vmatprep.subr.mxu0 0.0
    %98 = vmatpush1.msra.mxu0 %v18
    %99 = vmatprep.subr.mxu0 0.0
    %100 = vmatpush1.msra.mxu0 %v19
    %101 = vmatprep.subr.mxu0 0.0
    %102 = vmatpush1.msra.mxu0 %v20
    %103 = vmatprep.subr.mxu0 0.0
    %104 = vmatpush1.msra.mxu0 %v21
    %105 = vmatprep.subr.mxu0 0.0
    %106 = vmatpush1.msra.mxu0 %v22
    %107 = vmatprep.subr.mxu0 0.0
    %108 = vmatpush1.msra.mxu0 %v23
    %109 = vmatprep.subr.mxu0 0.0
    %110 = vmatpush1.msra.mxu0 %v24
    %111 = vmatprep.subr.mxu0 0.0
    %112 = vmatpush1.msra.mxu0 %v25
    %113 = vmatprep.subr.mxu0 0.0
    %114 = vmatpush1.msra.mxu0 %v26
    %115 = vmatprep.subr.mxu0 0.0
    %116 = vmatpush1.msra.mxu0 %v27
    %117 = vmatprep.subr.mxu0 0.0
    %118 = vmatpush1.msra.mxu0 %v28
    %119 = vmatprep.subr.mxu0 0.0
    %120 = vmatpush1.msra.mxu0 %v29
    %121 = vmatprep.subr.mxu0 0.0
    %122 = vmatpush1.msra.mxu0 %v30
    %123 = vmatprep.subr.mxu0 0.0
    %124 = vmatpush1.msra.mxu0 %v31
    %125 = vmatprep.subr.mxu0 0.0
    %126 = vmatpush1.msra.mxu0 %v32
    %127 = vmatprep.subr.mxu0 0.0
    %128 = vmatpush1.msra.mxu0 %v33
    %129 = vmatprep.subr.mxu0 0.0
    %130 = vmatpush1.msra.mxu0 %v34
    %131 = vmatprep.subr.mxu0 0.0
    %132 = vmatpush1.msra.mxu0 %v35
    %133 = vmatprep.subr.mxu0 0.0
    %134 = vmatpush1.msra.mxu0 %v36
    %135 = vmatprep.subr.mxu0 0.0
    %136 = vmatpush1.msra.mxu0 %v37
    %137 = vmatprep.subr.mxu0 0.0
    %138 = vmatpush1.msra.mxu0 %v38
    %139 = vmatprep.subr.mxu0 0.0
    %140 = vmatpush1.msra.mxu0 %v39
    %141 = vmatprep.subr.mxu0 0.0
    %142 = vmatpush1.msra.mxu0 %v40
    %143 = vmatprep.subr.mxu0 0.0
    %144 = vmatpush1.msra.mxu0 %v41
    %145 = vmatprep.subr.mxu0 0.0
    %146 = vmatpush1.msra.mxu0 %v42
    %147 = vmatprep.subr.mxu0 0.0
    %148 = vmatpush1.msra.mxu0 %v43
    %149 = vmatprep.subr.mxu0 0.0
    %150 = vmatpush1.msra.mxu0 %v44
    %151 = vmatprep.subr.mxu0 0.0
    %152 = vmatpush1.msra.mxu0 %v45
    %153 = vmatprep.subr.mxu0 0.0
    %154 = vmatpush1.msra.mxu0 %v46
    %155 = vmatprep.subr.mxu0 0.0
    %156 = vmatpush1.msra.mxu0 %v47
    %157 = vmatprep.subr.mxu0 0.0
    %158 = vmatpush1.msra.mxu0 %v48
    %159 = vmatprep.mubr.f32.mxu0 %v87
    %160 = vmatmul.mubr.f32.gmra.mrb[0].mxu0 %v79
    %v161 = vpop.f32.mrb[0].mxu0
    %v162 = vadd.f32 %v70, %v161
    %v163 = vpop.f32.mrb[0].mxu0
    %164 = vdwg.mxu0
    %165 = vmatprep.subr.mxu0 0.0
    %166 = vmatpush1.msra.mxu0 %v49
    %167 = vmatprep.subr.mxu0 0.0
    %168 = vmatpush1.msra.mxu0 %v50
    %169 = vmatprep.subr.mxu0 0.0
    %170 = vmatpush1.msra.mxu0 %v51
    %171 = vmatprep.subr.mxu0 0.0
    %172 = vmatpush1.msra.mxu0 %v52
    %173 = vmatprep.subr.mxu0 0.0
    %174 = vmatpush1.msra.mxu0 %v53
    %175 = vmatprep.subr.mxu0 0.0
    %176 = vmatpush1.msra.mxu0 %v54
    %177 = vmatprep.subr.mxu0 0.0
    %178 = vmatpush1.msra.mxu0 %v55
    %179 = vmatprep.subr.mxu0 0.0
    %180 = vmatpush1.msra.mxu0 %v56
    %181 = vmatprep.subr.mxu0 0.0
    %182 = vmatpush1.msra.mxu0 %v57
    %183 = vmatprep.subr.mxu0 0.0
    %184 = vmatpush1.msra.mxu0 %v58
    %185 = vmatprep.subr.mxu0 0.0
    %186 = vmatpush1.msra.mxu0 %v59
    %187 = vmatprep.subr.mxu0 0.0
    %188 = vmatpush1.msra.mxu0 %v60
    %189 = vmatprep.subr.mxu0 0.0
    %190 = vmatpush1.msra.mxu0 %v61
    %191 = vmatprep.subr.mxu0 0.0
    %192 = vmatpush1.msra.mxu0 %v62
    %193 = vmatprep.subr.mxu0 0.0
    %194 = vmatpush1.msra.mxu0 %v63
    %195 = vmatprep.subr.mxu0 0.0
    %196 = vmatpush1.msra.mxu0 %v64
    %197 = vmatprep.subr.mxu0 0.0
    %198 = vmatpush1.msra.mxu0 %v65
    %199 = vmatprep.subr.mxu0 0.0
    %200 = vmatpush1.msra.mxu0 %v66
    %201 = vmatprep.subr.mxu0 0.0
    %202 = vmatpush1.msra.mxu0 %v67
    %203 = vmatprep.subr.mxu0 0.0
    %204 = vmatpush1.msra.mxu0 %v68
    %205 = vmatprep.subr.mxu0 0.0
    %206 = vmatpush1.msra.mxu0 0.0
    %207 = vmatprep.subr.mxu0 0.0
    %208 = vmatpush1.msra.mxu0 0.0
    %209 = vmatprep.subr.mxu0 0.0
    %210 = vmatpush1.msra.mxu0 0.0
    %211 = vmatprep.subr.mxu0 0.0
    %212 = vmatpush1.msra.mxu0 0.0
    %213 = vmatprep.subr.mxu0 0.0
    %214 = vmatpush1.msra.mxu0 0.0
    %215 = vmatprep.subr.mxu0 0.0
    %216 = vmatpush1.msra.mxu0 0.0
    %217 = vmatprep.subr.mxu0 0.0
    %218 = vmatpush1.msra.mxu0 0.0
    %219 = vmatprep.subr.mxu0 0.0
    %220 = vmatpush1.msra.mxu0 0.0
    %221 = vmatprep.subr.mxu0 0.0
    %222 = vmatpush1.msra.mxu0 0.0
    %223 = vmatprep.subr.mxu0 0.0
    %224 = vmatpush1.msra.mxu0 0.0
    %225 = vmatprep.subr.mxu0 0.0
    %226 = vmatpush1.msra.mxu0 0.0
    %227 = vmatprep.subr.mxu0 0.0
    %228 = vmatpush1.msra.mxu0 0.0
    %229 = vmatprep.mubr.f32.mxu0 %v93
    %230 = vmatmul.mubr.f32.gmra.mrb[0].mxu0 %v86
    %v231 = vpop.f32.mrb[0].mxu0
    %v232 = vadd.f32 %v162, %v231
    %v233 = vpop.f32.mrb[0].mxu0
    %234 = vdwg.mxu0
    %vm235 = vcmask 91136
    %236 = vst.msk [vmem:[#allocation3] sm:$0x3] %vm235, %v232
    // Predicated region
    $region14: #{action_layer.1} parent=1 // pred_check
      _
    $region15: #{action_layer.1} parent=1 // pred_check_branch
      %238 = sbr.rel (0) target = $region17
    $region16: #{action_layer.1} parent=1 // pred_region
      %s240 = ssub.s32 32, 32
      %241 = vsyncadd [#allocation4], %s240
      %s243 = sshll.u32 [#allocation3], 4
      %s244 = int_to_ptr.vmem [resolvable:$true] %s243
      %246 = dma.vmem_to_hbm [thread:$0]  %s244, 32, %s3, [#allocation4]
    $region17: #{action_layer.1} parent=1 // pred_fallthru
      _
    // Predicated region
    $region18: #{action_layer.1} parent=1 // pred_check
      _
    $region19: #{action_layer.1} parent=1 // pred_check_branch
      %248 = sbr.rel (0) target = $region21
    $region20: #{action_layer.1} parent=1 // pred_region
      %249 = dma.done [#allocation4], 32
    $region21: #{action_layer.1} parent=1 // pred_fallthru
      _
    %250 = vsyncpa [#allocation4], 1

</llo_original>
